<compile_context>
chip_gen: v7x
topology: tpu7x:2x2x1
jax: 0.10.0
libtpu: 0.0.40
codegen_flags: <defaults>
</compile_context>

<pallas_src>
import jax
import jax.numpy as jnp
from jax import lax
from jax.experimental import pallas as pl
from jax.experimental.pallas import tpu as pltpu

LANES = 128
DEFAULT_TILE_BYTES = 4 << 20          # 4 MiB per buffer
VMEM_LIMIT_BYTES = 32 << 20           # 4 bufs x 4 MiB = 16 MiB << 32 MiB budget
DEFAULT_MIN_PALLAS_BYTES = 512 << 10  # below this, plain XLA fuses at roofline


def _make_rectified_poly_kernel(n):
    """Build an elementwise kernel specialized on the static exponent n."""
    n_f = float(n)
    if n_f.is_integer() and n_f > 0:
        n_int = int(n_f)

        def kernel(x_ref, o_ref):
            r = jnp.maximum(x_ref[...], 0.0)           # relu, scalar 0 (no bcast tile)
            # integer_pow strength-reduces to VPU multiplies (r*r for n=2)
            o_ref[...] = lax.integer_pow(r, n_int).astype(o_ref.dtype)

        return kernel

    # Non-integer static n (still a trace-time constant; no SMEM ref needed).
    def kernel(x_ref, o_ref):
        r = jnp.maximum(x_ref[...], 0.0)
        o_ref[...] = jnp.power(r, n_f).astype(o_ref.dtype)

    return kernel


def _rectified_poly_ref(x, n):
    """Plain-JAX fallback (XLA fuses relu+pow at HBM roofline)."""
    n_f = float(n)
    r = jnp.maximum(x, jnp.zeros((), dtype=x.dtype))
    if n_f.is_integer() and n_f > 0:
        return lax.integer_pow(r, int(n_f))
    return jnp.power(r, jnp.asarray(n_f, dtype=x.dtype))


def rectified_poly(x, n, *, tile_bytes=DEFAULT_TILE_BYTES,
                   min_pallas_bytes=DEFAULT_MIN_PALLAS_BYTES):
    """Computes pow(relu(x), n) elementwise for any-shaped x (e.g. NCHW).

    n must be a static Python number (RectifiedPoly's exponent hyperparameter).
    # TODO(synk): trainable n (train=True) would need a traced scalar (SMEM ref)
    # instead of closing over a Python constant.
    """
    orig_shape = x.shape
    dtype = x.dtype
    total = x.size
    itemsize = jnp.dtype(dtype).itemsize

    # Small or lane-unaligned inputs: let XLA fuse it.  This avoids both the
    # fixed pallas_call launch cost on KB-scale tensors and the old
    # pad + trailing-slice full-tensor copies on the total % 128 != 0 path.
    if total * itemsize < min_pallas_bytes or total % LANES != 0:
        return _rectified_poly_ref(x, n)

    rows = total // LANES
    slab = jnp.ravel(x).reshape(rows, LANES)   # lane-dense, no padding needed

    # Sublane multiple by dtype packing: 8 for f32, 16 for bf16, 32 for 8-bit.
    subl = max(8, 32 // max(itemsize, 1))
    # Constant-byte tiles: every dtype amortizes per-step overhead equally.
    tr = max(subl, tile_bytes // (LANES * itemsize))
    tr = min(tr, rows)
    tr = ((tr + subl - 1) // subl) * subl      # round up to packed sublane multiple

    grid = (pl.cdiv(rows, tr),)                # boundary block masked by Pallas

    n_f = float(n)
    flops_per_elem = int(n_f) if (n_f.is_integer() and n_f > 0) else 2
    cost = pl.CostEstimate(
        flops=flops_per_elem * total,
        transcendentals=0 if (n_f.is_integer() and n_f > 0) else total,
        bytes_accessed=2 * total * itemsize,
    )

    out = pl.pallas_call(
        _make_rectified_poly_kernel(n),
        out_shape=jax.ShapeDtypeStruct((rows, LANES), dtype),
        grid_spec=pltpu.PrefetchScalarGridSpec(
            num_scalar_prefetch=0,
            grid=grid,
            in_specs=[pl.BlockSpec((tr, LANES), lambda i: (i, 0))],
            out_specs=pl.BlockSpec((tr, LANES), lambda i: (i, 0)),
        ),
        compiler_params=pltpu.CompilerParams(
            dimension_semantics=("parallel",),     # megacore-shardable
            vmem_limit_bytes=VMEM_LIMIT_BYTES,     # 4 bufs x tile must fit here
        ),
        cost_estimate=cost,
        input_output_aliases={0: 0},               # overwrite the slab in place
    )(slab)

    return out.reshape(orig_shape)


if __name__ == "__main__":
    # RectifiedPoly(n=2) — exponent is a static hyperparameter (train=False).
    n_param = 2.0

    key = jax.random.PRNGKey(0)
    x = jax.random.normal(key, (2, 4, 16, 16), dtype=jnp.float32)  # NCHW

    # Force the Pallas path for the small demo tensor (production calls use the
    # default min_pallas_bytes so KB-scale inputs stay in fused XLA).
    y = rectified_poly(x, n_param, min_pallas_bytes=0)
    jax.block_until_ready(y)

    # reference check in plain JAX
    ref = jnp.power(jnp.maximum(x, 0.0), n_param)
    assert y.shape == x.shape and y.dtype == x.dtype
    assert jnp.allclose(y, ref, atol=1e-5, rtol=1e-5)

    print("KERNEL_OK")
</pallas_src>

<mosaic_0001>
module attributes {stable_mosaic.version = 11 : i64} {
  func.func @kernel(%arg0: i32, %arg1: memref<16x128xf32, #tpu.memory_space<vmem>>, %arg2: memref<16x128xf32, #tpu.memory_space<vmem>>) attributes {dimension_semantics = [#tpu.dimension_semantics<parallel>], iteration_bounds = array<i64: 1>, scalar_prefetch = 0 : i64, scratch_operands = 0 : i64, tpu.core_type = #tpu.core_type<tc>, window_params = [{transform_indices = @transform_0, window_bounds = array<i64: 16, 128>}, {transform_indices = @transform_1, window_bounds = array<i64: 16, 128>}]} {
    %c0 = arith.constant 0 : index
    %c0_0 = arith.constant 0 : index
    %0 = vector.load %arg1[%c0, %c0_0] : memref<16x128xf32, #tpu.memory_space<vmem>>, vector<16x128xf32>
    %cst = arith.constant 0.000000e+00 : f32
    %1 = vector.broadcast %cst : f32 to vector<16x128xf32>
    %2 = arith.maximumf %0, %1 : vector<16x128xf32>
    %3 = arith.mulf %2, %2 : vector<16x128xf32>
    %c0_1 = arith.constant 0 : index
    %c0_2 = arith.constant 0 : index
    %4 = vector.load %arg2[%c0_1, %c0_2] : memref<16x128xf32, #tpu.memory_space<vmem>>, vector<16x128xf32>
    tpu.vector_store %arg2[%c0_1, %c0_2], %3 {strides = array<i32>} : memref<16x128xf32, #tpu.memory_space<vmem>>, vector<16x128xf32>,
    return
  }
  func.func @transform_0(%arg0: i32) -> (i32, i32) {
    %c0_i32 = arith.constant 0 : i32
    %c0_i32_0 = arith.constant 0 : i32
    return %arg0, %c0_i32 : i32, i32
  }
  func.func @transform_1(%arg0: i32) -> (i32, i32) {
    %c0_i32 = arith.constant 0 : i32
    %c0_i32_0 = arith.constant 0 : i32
    return %arg0, %c0_i32 : i32, i32
  }
}

</mosaic_0001>

<llo_original>
// kernel: tpu_custom_call.1
$region0: #{tpu_custom_call.1}
  #allocation0 [shape = 'u32[]', space=smem, size = 0x4, offset = 0x4, fixed_abs, tag = 'smem constant byte address 0x4 - core index']
  #allocation1 [shape = 'u32[144,128]{1,0:T(1,128)}', space=vmem, size = 0x12000, scoped, tag = 'internal scratch']
  %s0 = inlined_call_operand.hbm [shape: f32[16,128], index: 0, kind: input, shape index: {}, may-alias: {0,1}]
  %s1 = inlined_call_operand.hbm [shape: f32[16,128], index: 1, kind: output, shape index: {}, may-alias: {0,1}]
  %s2 = sld [smem:[#allocation0]]
  $region18: #{tpu_custom_call.1} parent=0
    _
  %s4 = ssub.s32 1, %s2
  %s5 = scalar_select 0, %s4, %s2
  $region1: #{tpu_custom_call.1} parent=0
    #allocation2 [shape = 'u8[8192]{0}', space=vmem, size = 0x2000, scoped, tag = 'input window, operand 0, single buffered']
    #allocation3 [shape = 's32[1]{0}', space=sflag, size = 0x4, scoped, tag = 'scoped memory for tpu_custom_call.1']
    #allocation4 [shape = 's32[1]{0}', space=sflag, size = 0x4, scoped, tag = 'scoped memory for tpu_custom_call.1']
    #allocation5 [shape = 'u8[8192]{0}', space=vmem, size = 0x2000, scoped, tag = 'output window, operand 0, single buffered']
    %6 = vsyncpa [#allocation3], 0
    %7 = vsyncpa [#allocation4], 0
    // Predicated region
    $region2: #{tpu_custom_call.1} parent=1 // pred_check
      _
    $region3: #{tpu_custom_call.1} parent=1 // pred_check_branch
      %9 = sbr.rel (0) target = $region5
    $region4: #{tpu_custom_call.1} parent=1 // pred_region
      %s11 = ssub.s32 256, 256
      %12 = vsyncadd [#allocation3], %s11
      %s13 = sshll.u32 [#allocation2], 4
      %s14 = int_to_ptr.vmem [resolvable:$true] %s13
      %19 = dma.hbm_to_vmem [thread:$0]  %s0, 256, %s14, [#allocation3], 128, 128, 8
    $region5: #{tpu_custom_call.1} parent=1 // pred_fallthru
      _
    // Predicated region
    $region6: #{tpu_custom_call.1} parent=1 // pred_check
      _
    $region7: #{tpu_custom_call.1} parent=1 // pred_check_branch
      %21 = sbr.rel (0) target = $region9
    $region8: #{tpu_custom_call.1} parent=1 // pred_region
      %22 = dma.done [#allocation3], 256
    $region9: #{tpu_custom_call.1} parent=1 // pred_fallthru
      _
    %v23 = vld [vmem:[#allocation2] sm:$0xff]
    %v24 = vld [vmem:[#allocation2 + $0x8] sm:$0xff]
    %v25 = vmax.f32 %v23, 0.0
    %v26 = vmax.f32 %v24, 0.0
    %v27 = vmul.f32 %v25, %v25
    %v28 = vmul.f32 %v26, %v26
    %29 = vst [vmem:[#allocation5] sm:$0xff] %v27
    %30 = vst [vmem:[#allocation5 + $0x8] sm:$0xff] %v28
    // Predicated region
    $region10: #{tpu_custom_call.1} parent=1 // pred_check
      _
    $region11: #{tpu_custom_call.1} parent=1 // pred_check_branch
      %32 = sbr.rel (0) target = $region13
    $region12: #{tpu_custom_call.1} parent=1 // pred_region
      %s34 = ssub.s32 256, 256
      %35 = vsyncadd [#allocation4], %s34
      %s36 = sshll.u32 [#allocation5], 4
      %s37 = int_to_ptr.vmem [resolvable:$true] %s36
      %42 = dma.vmem_to_hbm [thread:$0]  %s37, 256, %s1, [#allocation4], 128, 128, 8
    $region13: #{tpu_custom_call.1} parent=1 // pred_fallthru
      _
    // Predicated region
    $region14: #{tpu_custom_call.1} parent=1 // pred_check
      _
    $region15: #{tpu_custom_call.1} parent=1 // pred_check_branch
      %44 = sbr.rel (0) target = $region17
    $region16: #{tpu_custom_call.1} parent=1 // pred_region
      %45 = dma.done [#allocation4], 256
    $region17: #{tpu_custom_call.1} parent=1 // pred_fallthru
      _
    %46 = vsyncpa [#allocation3], 1
    %47 = vsyncpa [#allocation4], 1

</llo_original>
